<compile_context>
chip_gen: v7x
topology: tpu7x:2x2x1
jax: 0.10.0
libtpu: 0.0.40
codegen_flags: <defaults>
</compile_context>

<pallas_src>
import jax
import jax.numpy as jnp
from jax.experimental import pallas as pl
from jax.experimental.pallas import tpu as pltpu


# ----------------------------------------------------------------------------
# Fused kernel: phase-batched matmul (MXU) + BatchNorm(batch stats) + ReLU
# ----------------------------------------------------------------------------
def _fused_deconv_bn_relu_kernel(w_ref, x_ref, gb_ref, o_ref):
    # w_ref : (P, Cout, K)      bf16   per-phase weight matrices
    # x_ref : (P, K, N*Mq)      bf16   per-phase im2col (cols: batch-major, spatial)
    # gb_ref: (Cout, 2)         f32    packed gamma / beta
    # o_ref : (N, P, Cout, Mq)  f32    fused output (lane dim Mq = Hq*Wq)
    N, P, Cout, Mq = o_ref.shape

    # One batched matmul over the P = s*s phases (K = taps*Cin, no zero MACs).
    # bf16 x bf16 -> f32 accumulation on the MXU.
    y = jnp.einsum('pck,pkm->pcm', w_ref[...], x_ref[...],
                   preferred_element_type=jnp.float32)          # (P, Cout, N*Mq) f32

    # BatchNorm2d training-mode statistics: per-channel mean / biased variance
    # over all (batch, spatial) positions == all (phase, column) entries.
    n_stat = float(y.shape[0] * y.shape[2])                     # N * Ho * Wo
    ssum = jnp.sum(y, axis=2, keepdims=True)                    # (P, Cout, 1) lane reduce
    mean = jnp.sum(ssum, axis=0, keepdims=True) / n_stat        # (1, Cout, 1)
    d = y - mean
    ssq = jnp.sum(d * d, axis=2, keepdims=True)                 # (P, Cout, 1)
    var = jnp.sum(ssq, axis=0, keepdims=True) / n_stat          # (1, Cout, 1)

    gamma = gb_ref[:, 0:1].reshape(1, Cout, 1)                  # f32
    beta = gb_ref[:, 1:2].reshape(1, Cout, 1)
    scale = gamma * jax.lax.rsqrt(var + 0.001)                  # (1, Cout, 1)
    shift = beta - mean * scale

    out = jnp.maximum(y * scale + shift, 0.0)                   # (P, Cout, N*Mq) f32

    # Lane-dense per-batch writes: (P, Cout, Mq) blocks, Mq = 256 lanes.
    for n in range(N):
        o_ref[n] = out[:, :, n * Mq:(n + 1) * Mq]


# ----------------------------------------------------------------------------
# Phase decomposition helper: for output index o = s*a + r, the contributing
# original kernel index kh satisfies s*ih + kh = o + p, i.e. kh == (r+p) mod s
# and input offset delta = (r + p - kh) // s  (x index is a + delta).
# ----------------------------------------------------------------------------
def _phase_taps(k, s, p):
    taps = []
    for r in range(s):
        tl = [(kh, (r + p - kh) // s) for kh in range(k) if (r + p - kh) % s == 0]
        taps.append(tl)
    return taps


def basic_deconv2d(x_nchw, weight, gamma, beta, *, stride, padding):
    """weight: (in_planes, out_planes, kH, kW) as in torch.nn.ConvTranspose2d."""
    N, Cin, H, W = x_nchw.shape
    Cin_w, Cout, kH, kW = weight.shape
    assert Cin == Cin_w
    s, p = stride, padding
    Ho = (H - 1) * s - 2 * p + kH
    Wo = (W - 1) * s - 2 * p + kW
    # Restrictions of the phase decomposition used here (hold for k=4, s=2, p=1).
    assert kH % s == 0 and kW % s == 0, "phase decomposition needs s | kernel_size"
    assert Ho % s == 0 and Wo % s == 0, "phase decomposition needs s | output size"
    Hq, Wq = Ho // s, Wo // s

    taps_h = _phase_taps(kH, s, p)
    taps_w = _phase_taps(kW, s, p)
    Th, Tw = len(taps_h[0]), len(taps_w[0])
    assert all(len(t) == Th for t in taps_h) and all(len(t) == Tw for t in taps_w)
    T = Th * Tw                       # taps per phase  ( (k/s)^2 )
    K = T * Cin                       # contraction depth per phase
    P = s * s                         # number of phases
    Mq = Hq * Wq                      # spatial columns per phase per batch

    # Zero-padding of the *original* input needed to cover all tap offsets.
    dh_all = [d for tl in taps_h for (_, d) in tl]
    dw_all = [d for tl in taps_w for (_, d) in tl]
    pad_lo_h = max(0, -min(dh_all))
    pad_hi_h = max(0, max(dh_all) + Hq - H)
    pad_lo_w = max(0, -min(dw_all))
    pad_hi_w = max(0, max(dw_all) + Wq - W)

    # NCHW -> NHWC, pad (no zero-dilation anywhere).
    x = jnp.transpose(x_nchw, (0, 2, 3, 1)).astype(jnp.float32)
    x_pad = jnp.pad(x, ((0, 0), (pad_lo_h, pad_hi_h), (pad_lo_w, pad_hi_w), (0, 0)))

    # Per-phase im2col (one XLA relayout) + per-phase weight matrices.
    phase_cols, phase_w = [], []
    for rh in range(s):
        for rw in range(s):
            cols, wts = [], []
            for kh, dh in taps_h[rh]:
                for kw_, dw in taps_w[rw]:
                    eh, ew = dh + pad_lo_h, dw + pad_lo_w
                    cols.append(x_pad[:, eh:eh + Hq, ew:ew + Wq, :])   # (N,Hq,Wq,Cin)
                    wts.append(weight[:, :, kh, kw_])                  # (Cin,Cout)
            xc = jnp.stack(cols, axis=1)                               # (N,T,Hq,Wq,Cin)
            xc = jnp.transpose(xc, (0, 1, 4, 2, 3)).reshape(N, K, Mq)  # (N,K,Mq)
            phase_cols.append(xc)
            wp = jnp.stack(wts, axis=0).reshape(K, Cout)               # (K,Cout)
            phase_w.append(wp.T)                                       # (Cout,K)

    xcol = jnp.stack(phase_cols, axis=0)                               # (P,N,K,Mq)
    xcol = jnp.transpose(xcol, (0, 2, 1, 3)).reshape(P, K, N * Mq)
    xcol = xcol.astype(jnp.bfloat16)                                   # MXU operand
    wmat = jnp.stack(phase_w, axis=0).astype(jnp.bfloat16)             # (P,Cout,K)
    gb = jnp.stack([gamma.astype(jnp.float32),
                    beta.astype(jnp.float32)], axis=1)                 # (Cout,2)

    o = pl.pallas_call(
        _fused_deconv_bn_relu_kernel,
        out_shape=jax.ShapeDtypeStruct((N, P, Cout, Mq), jnp.float32),
        in_specs=[pl.BlockSpec(memory_space=pltpu.MemorySpace.VMEM)] * 3,
        out_specs=pl.BlockSpec(memory_space=pltpu.MemorySpace.VMEM),
    )(wmat, xcol, gb)

    # Depth-to-space (sub-pixel interleave) back to NCHW.  Doing this in-kernel
    # would require lane-strided stores, so it stays a cheap XLA reshape/transpose.
    o = o.reshape(N, s, s, Cout, Hq, Wq)
    o = jnp.transpose(o, (0, 3, 4, 1, 5, 2)).reshape(N, Cout, Ho, Wo)
    return o


# ----------------------------------------------------------------------------
# Pure-XLA reference (same formulation as the original, known-correct version).
# ----------------------------------------------------------------------------
def _reference(x_nchw, weight, gamma, beta, stride, padding, eps=0.001):
    Cin, Cout, kH, kW = weight.shape
    w_rot = jnp.transpose(weight[:, :, ::-1, ::-1], (1, 0, 2, 3))  # (Cout,Cin,kH,kW)
    y = jax.lax.conv_general_dilated(
        x_nchw, w_rot, window_strides=(1, 1),
        padding=[(kH - 1 - padding,) * 2, (kW - 1 - padding,) * 2],
        lhs_dilation=(stride, stride),
        dimension_numbers=('NCHW', 'OIHW', 'NCHW'))
    mean = jnp.mean(y, axis=(0, 2, 3), keepdims=True)
    var = jnp.mean((y - mean) ** 2, axis=(0, 2, 3), keepdims=True)
    yhat = (y - mean) / jnp.sqrt(var + eps)
    out = yhat * gamma.reshape(1, -1, 1, 1) + beta.reshape(1, -1, 1, 1)
    return jnp.maximum(out, 0.0)


if __name__ == "__main__":
    key = jax.random.PRNGKey(0)
    k_x, k_w = jax.random.split(key)

    # Module config: BasicDeConv2d(in_planes=4, out_planes=8, kernel_size=4,
    #                              stride=2, padding=1)  -> 2x spatial upsample
    N, Cin, H, W = 2, 4, 16, 16
    Cout, ksize, stride, padding = 8, 4, 2, 1

    x = jax.random.normal(k_x, (N, Cin, H, W), jnp.float32)
    # ConvTranspose2d weight: (in_planes, out_planes, kH, kW), bias=False.
    weight = jax.random.normal(k_w, (Cin, Cout, ksize, ksize), jnp.float32) \
        / jnp.sqrt(float(Cin * ksize * ksize))
    gamma = jnp.ones((Cout,), jnp.float32)   # BatchNorm2d default weight
    beta = jnp.zeros((Cout,), jnp.float32)   # BatchNorm2d default bias

    out = basic_deconv2d(x, weight, gamma, beta, stride=stride, padding=padding)
    out = jax.block_until_ready(out)

    Ho = (H - 1) * stride - 2 * padding + ksize
    Wo = (W - 1) * stride - 2 * padding + ksize
    assert out.shape == (N, Cout, Ho, Wo)

    # Tight check: reference evaluated on the same bf16-rounded MXU operands
    # (isolates kernel math; accumulation / BN / ReLU are fp32 on both sides).
    x_r = x.astype(jnp.bfloat16).astype(jnp.float32)
    w_r = weight.astype(jnp.bfloat16).astype(jnp.float32)
    ref_tight = _reference(x_r, w_r, gamma, beta, stride, padding)
    assert jnp.allclose(out, ref_tight, atol=1e-3, rtol=1e-3), \
        "mismatch vs XLA reference (bf16-rounded operands)"

    # Loose sanity check vs the full-fp32 reference (bf16 operand rounding budget).
    ref_f32 = _reference(x, weight, gamma, beta, stride, padding)
    assert jnp.allclose(out, ref_f32, atol=5e-2, rtol=5e-2), \
        "mismatch vs fp32 XLA reference beyond bf16 rounding budget"

    print("KERNEL_OK")
</pallas_src>

<mosaic_0001>
module attributes {stable_mosaic.version = 11 : i64} {
  func.func @_fused_deconv_bn_relu_kernel(%arg0: memref<4x8x16xbf16, #tpu.memory_space<vmem>>, %arg1: memref<4x16x512xbf16, #tpu.memory_space<vmem>>, %arg2: memref<8x2xf32, #tpu.memory_space<vmem>>, %arg3: memref<2x4x8x256xf32, #tpu.memory_space<vmem>>) attributes {dimension_semantics = [], scalar_prefetch = 0 : i64, scratch_operands = 0 : i64, tpu.core_type = #tpu.core_type<tc>} {
    %c0 = arith.constant 0 : index
    %c0_0 = arith.constant 0 : index
    %c0_1 = arith.constant 0 : index
    %0 = vector.load %arg0[%c0, %c0_0, %c0_1] : memref<4x8x16xbf16, #tpu.memory_space<vmem>>, vector<4x8x16xbf16>
    %c0_2 = arith.constant 0 : index
    %c0_3 = arith.constant 0 : index
    %c0_4 = arith.constant 0 : index
    %1 = vector.load %arg1[%c0_2, %c0_3, %c0_4] : memref<4x16x512xbf16, #tpu.memory_space<vmem>>, vector<4x16x512xbf16>
    "tpu.trace_start"() <{level = 10 : i32, message = "pck,pkm->pcm"}> : () -> ()
    %cst = arith.constant dense<0.000000e+00> : vector<4x8x512xf32>
    %2 = tpu.matmul %0, %1, %cst {dimension_numbers = #tpu.dot_dimension_numbers<[2], [1], [1], [2], [0, 0, 0, 1, 1, 2], [0], [0]>} : vector<4x8x16xbf16>, vector<4x16x512xbf16>, vector<4x8x512xf32> -> vector<4x8x512xf32>
    "tpu.trace_stop"() : () -> ()
    %cst_5 = arith.constant dense<0.000000e+00> : vector<4x8xf32>
    %3 = vector.multi_reduction <add>, %2, %cst_5 [2] : vector<4x8x512xf32> to vector<4x8xf32>
    %4 = vector.shape_cast %3 : vector<4x8xf32> to vector<4x8x1xf32>
    %cst_6 = arith.constant dense<0.000000e+00> : vector<8x1xf32>
    %5 = vector.multi_reduction <add>, %4, %cst_6 [0] : vector<4x8x1xf32> to vector<8x1xf32>
    %6 = vector.shape_cast %5 : vector<8x1xf32> to vector<1x8x1xf32>
    %cst_7 = arith.constant 2.048000e+03 : f32
    %7 = vector.broadcast %cst_7 : f32 to vector<1x8x1xf32>
    %8 = arith.divf %6, %7 : vector<1x8x1xf32>
    %9 = vector.broadcast %8 : vector<1x8x1xf32> to vector<4x8x512xf32>
    %10 = arith.subf %2, %9 : vector<4x8x512xf32>
    %11 = arith.mulf %10, %10 : vector<4x8x512xf32>
    %cst_8 = arith.constant dense<0.000000e+00> : vector<4x8xf32>
    %12 = vector.multi_reduction <add>, %11, %cst_8 [2] : vector<4x8x512xf32> to vector<4x8xf32>
    %13 = vector.shape_cast %12 : vector<4x8xf32> to vector<4x8x1xf32>
    %cst_9 = arith.constant dense<0.000000e+00> : vector<8x1xf32>
    %14 = vector.multi_reduction <add>, %13, %cst_9 [0] : vector<4x8x1xf32> to vector<8x1xf32>
    %15 = vector.shape_cast %14 : vector<8x1xf32> to vector<1x8x1xf32>
    %cst_10 = arith.constant 2.048000e+03 : f32
    %16 = vector.broadcast %cst_10 : f32 to vector<1x8x1xf32>
    %17 = arith.divf %15, %16 : vector<1x8x1xf32>
    %c0_11 = arith.constant 0 : index
    %c0_12 = arith.constant 0 : index
    %18 = vector.load %arg2[%c0_11, %c0_12] : memref<8x2xf32, #tpu.memory_space<vmem>>, vector<8x1xf32>
    %19 = vector.shape_cast %18 : vector<8x1xf32> to vector<1x8x1xf32>
    %c0_13 = arith.constant 0 : index
    %c1 = arith.constant 1 : index
    %20 = vector.load %arg2[%c0_13, %c1] : memref<8x2xf32, #tpu.memory_space<vmem>>, vector<8x1xf32>
    %21 = vector.shape_cast %20 : vector<8x1xf32> to vector<1x8x1xf32>
    %cst_14 = arith.constant 1.000000e-03 : f32
    %22 = vector.broadcast %cst_14 : f32 to vector<1x8x1xf32>
    %23 = arith.addf %17, %22 : vector<1x8x1xf32>
    %24 = math.rsqrt %23 : vector<1x8x1xf32>
    %25 = arith.mulf %19, %24 : vector<1x8x1xf32>
    %26 = arith.mulf %8, %25 : vector<1x8x1xf32>
    %27 = arith.subf %21, %26 : vector<1x8x1xf32>
    %28 = vector.broadcast %25 : vector<1x8x1xf32> to vector<4x8x512xf32>
    %29 = arith.mulf %2, %28 : vector<4x8x512xf32>
    %30 = vector.broadcast %27 : vector<1x8x1xf32> to vector<4x8x512xf32>
    %31 = arith.addf %29, %30 : vector<4x8x512xf32>
    %cst_15 = arith.constant 0.000000e+00 : f32
    %32 = vector.broadcast %cst_15 : f32 to vector<4x8x512xf32>
    %33 = arith.maximumf %31, %32 : vector<4x8x512xf32>
    %34 = vector.extract_strided_slice %33 {offsets = [0, 0, 0], sizes = [4, 8, 256], strides = [1, 1, 1]} : vector<4x8x512xf32> to vector<4x8x256xf32>
    %c0_16 = arith.constant 0 : index
    %c0_17 = arith.constant 0 : index
    %c0_18 = arith.constant 0 : index
    %c0_19 = arith.constant 0 : index
    %35 = vector.load %arg3[%c0_16, %c0_17, %c0_18, %c0_19] : memref<2x4x8x256xf32, #tpu.memory_space<vmem>>, vector<1x4x8x256xf32>
    %36 = vector.shape_cast %35 : vector<1x4x8x256xf32> to vector<4x8x256xf32>
    %37 = vector.shape_cast %34 : vector<4x8x256xf32> to vector<1x4x8x256xf32>
    tpu.vector_store %arg3[%c0_16, %c0_17, %c0_18, %c0_19], %37 {strides = array<i32>} : memref<2x4x8x256xf32, #tpu.memory_space<vmem>>, vector<1x4x8x256xf32>,
    %38 = vector.extract_strided_slice %33 {offsets = [0, 0, 256], sizes = [4, 8, 256], strides = [1, 1, 1]} : vector<4x8x512xf32> to vector<4x8x256xf32>
    %c1_20 = arith.constant 1 : index
    %c0_21 = arith.constant 0 : index
    %c0_22 = arith.constant 0 : index
    %c0_23 = arith.constant 0 : index
    %39 = vector.load %arg3[%c1_20, %c0_21, %c0_22, %c0_23] : memref<2x4x8x256xf32, #tpu.memory_space<vmem>>, vector<1x4x8x256xf32>
    %40 = vector.shape_cast %39 : vector<1x4x8x256xf32> to vector<4x8x256xf32>
    %41 = vector.shape_cast %38 : vector<4x8x256xf32> to vector<1x4x8x256xf32>
    tpu.vector_store %arg3[%c1_20, %c0_21, %c0_22, %c0_23], %41 {strides = array<i32>} : memref<2x4x8x256xf32, #tpu.memory_space<vmem>>, vector<1x4x8x256xf32>,
    return
  }
}

</mosaic_0001>

<llo_original>
// kernel: tpu_custom_call.1
$region0: #{tpu_custom_call.1}
  #allocation0 [shape = 'u32[]', space=smem, size = 0x4, offset = 0x4, fixed_abs, tag = 'smem constant byte address 0x4 - core index']
  #allocation1 [shape = 'u32[144,128]{1,0:T(1,128)}', space=vmem, size = 0x12000, scoped, tag = 'internal scratch']
  %s0 = inlined_call_operand.hbm [shape: bf16[4,8,16], index: 0, kind: input, shape index: {}]
  %s1 = inlined_call_operand.hbm [shape: bf16[4,16,512], index: 1, kind: input, shape index: {}]
  %s2 = inlined_call_operand.vmem [shape: f32[8,2], index: 2, kind: input, shape index: {}]
  %s3 = inlined_call_operand.hbm [shape: f32[2,4,8,256], index: 3, kind: output, shape index: {}]
  %s4 = sld [smem:[#allocation0]]
  $region30: #{tpu_custom_call.1} parent=0
    _
  %s6 = ssub.s32 1, %s4
  %s7 = scalar_select 0, %s6, %s4
  $region1: #{tpu_custom_call.1} parent=0
    #allocation2 [shape = 'u8[8192]{0}', space=vmem, size = 0x2000, scoped, tag = 'input window, operand 0, single buffered']
    #allocation3 [shape = 's32[1]{0}', space=sflag, size = 0x4, scoped, tag = 'scoped memory for tpu_custom_call.1']
    #allocation4 [shape = 's32[1]{0}', space=sflag, size = 0x4, scoped, tag = 'scoped memory for tpu_custom_call.1']
    #allocation5 [shape = 'u8[65536]{0}', space=vmem, size = 0x10000, scoped, tag = 'input window, operand 1, single buffered']
    #allocation6 [shape = 's32[1]{0}', space=sflag, size = 0x4, scoped, tag = 'scoped memory for tpu_custom_call.1']
    #allocation7 [shape = 'u8[65536]{0}', space=vmem, size = 0x10000, scoped, tag = 'output window, operand 0, single buffered']
    %8 = vsyncpa [#allocation3], 0
    %9 = vsyncpa [#allocation6], 0
    %10 = vsyncpa [#allocation4], 0
    // Predicated region
    $region2: #{tpu_custom_call.1} parent=1 // pred_check
      _
    $region3: #{tpu_custom_call.1} parent=1 // pred_check_branch
      %12 = sbr.rel (0) target = $region5
    $region4: #{tpu_custom_call.1} parent=1 // pred_region
      %s14 = ssub.s32 256, 256
      %15 = vsyncadd [#allocation3], %s14
      %s16 = sshll.u32 [#allocation2], 4
      %s17 = int_to_ptr.vmem [resolvable:$true] %s16
      %22 = dma.hbm_to_vmem [thread:$0]  %s0, 256, %s17, [#allocation3], 64, 64, 4
    $region5: #{tpu_custom_call.1} parent=1 // pred_fallthru
      _
    // Predicated region
    $region6: #{tpu_custom_call.1} parent=1 // pred_check
      _
    $region7: #{tpu_custom_call.1} parent=1 // pred_check_branch
      %24 = sbr.rel (0) target = $region9
    $region8: #{tpu_custom_call.1} parent=1 // pred_region
      %s26 = ssub.s32 2048, 2048
      %27 = vsyncadd [#allocation6], %s26
      %s28 = sshll.u32 [#allocation5], 4
      %s29 = int_to_ptr.vmem [resolvable:$true] %s28
      %34 = dma.hbm_to_vmem [thread:$0]  %s1, 2048, %s29, [#allocation6], 256, 256, 16
    $region9: #{tpu_custom_call.1} parent=1 // pred_fallthru
      _
    // Predicated region
    $region10: #{tpu_custom_call.1} parent=1 // pred_check
      _
    $region11: #{tpu_custom_call.1} parent=1 // pred_check_branch
      %36 = sbr.rel (0) target = $region13
    $region12: #{tpu_custom_call.1} parent=1 // pred_region
      _
    $region13: #{tpu_custom_call.1} parent=1 // pred_fallthru
      _
    // Predicated region
    $region14: #{tpu_custom_call.1} parent=1 // pred_check
      _
    $region15: #{tpu_custom_call.1} parent=1 // pred_check_branch
      %38 = sbr.rel (0) target = $region17
    $region16: #{tpu_custom_call.1} parent=1 // pred_region
      %39 = dma.done [#allocation3], 256
    $region17: #{tpu_custom_call.1} parent=1 // pred_fallthru
      _
    // Predicated region
    $region18: #{tpu_custom_call.1} parent=1 // pred_check
      _
    $region19: #{tpu_custom_call.1} parent=1 // pred_check_branch
      %41 = sbr.rel (0) target = $region21
    $region20: #{tpu_custom_call.1} parent=1 // pred_region
      %42 = dma.done [#allocation6], 2048
    $region21: #{tpu_custom_call.1} parent=1 // pred_fallthru
      _
    %v44 = vld [vmem:[#allocation2] sm:$0xf]
    %v45 = vld [vmem:[#allocation2 + $0x4] sm:$0xf]
    %v46 = vld [vmem:[#allocation2 + $0x8] sm:$0xf]
    %v47 = vld [vmem:[#allocation2 + $0xc] sm:$0xf]
    %v48 = vld [vmem:[#allocation5] sm:$0xff]
    %v49 = vld [vmem:[#allocation5 + $0x8] sm:$0xff]
    %v50 = vld [vmem:[#allocation5 + $0x10] sm:$0xff]
    %v51 = vld [vmem:[#allocation5 + $0x18] sm:$0xff]
    %v52 = vld [vmem:[#allocation5 + $0x20] sm:$0xff]
    %v53 = vld [vmem:[#allocation5 + $0x28] sm:$0xff]
    %v54 = vld [vmem:[#allocation5 + $0x30] sm:$0xff]
    %v55 = vld [vmem:[#allocation5 + $0x38] sm:$0xff]
    %v56 = vld [vmem:[#allocation5 + $0x40] sm:$0xff]
    %v57 = vld [vmem:[#allocation5 + $0x48] sm:$0xff]
    %v58 = vld [vmem:[#allocation5 + $0x50] sm:$0xff]
    %v59 = vld [vmem:[#allocation5 + $0x58] sm:$0xff]
    %v60 = vld [vmem:[#allocation5 + $0x60] sm:$0xff]
    %v61 = vld [vmem:[#allocation5 + $0x68] sm:$0xff]
    %v62 = vld [vmem:[#allocation5 + $0x70] sm:$0xff]
    %v63 = vld [vmem:[#allocation5 + $0x78] sm:$0xff]
    %v68 = vunpack.c.l.b16 %v48
    %v69 = vunpack.c.h.b16 %v48
    %v70 = vunpack.c.l.b16 %v49
    %v71 = vunpack.c.h.b16 %v49
    %v72 = vunpack.c.l.b16 %v50
    %v73 = vunpack.c.h.b16 %v50
    %v74 = vunpack.c.l.b16 %v51
    %v75 = vunpack.c.h.b16 %v51
    %v76 = vpack.c.b16 %v72, %v68
    %v77 = vpack.c.b16 %v73, %v69
    %v78 = vpack.c.b16 %v74, %v70
    %v79 = vpack.c.b16 %v75, %v71
    %vm84 = vcmask 130048
    %v86 = vsel %vm84, %v44, 0
    %88 = vmatprep.subr.bf16.mxu0 %v77
    %89 = vmatpush1.bf16.msra.mxu0 %v76
    %90 = vmatprep.subr.bf16.mxu0 0
    %91 = vmatpush1.bf16.msra.mxu0 0
    %92 = vmatprep.subr.bf16.mxu0 0
    %93 = vmatpush1.bf16.msra.mxu0 0
    %94 = vmatprep.subr.bf16.mxu0 0
    %95 = vmatpush1.bf16.msra.mxu0 0
    %96 = vmatprep.subr.bf16.mxu0 0
    %97 = vmatpush1.bf16.msra.mxu0 0
    %98 = vmatprep.subr.bf16.mxu0 0
    %99 = vmatpush1.bf16.msra.mxu0 0
    %100 = vmatprep.subr.bf16.mxu0 0
    %101 = vmatpush1.bf16.msra.mxu0 0
    %102 = vmatprep.subr.bf16.mxu0 0
    %103 = vmatpush1.bf16.msra.mxu0 0
    %104 = vmatprep.subr.bf16.mxu0 0
    %105 = vmatpush1.bf16.msra.mxu0 0
    %106 = vmatprep.subr.bf16.mxu0 0
    %107 = vmatpush1.bf16.msra.mxu0 0
    %108 = vmatprep.subr.bf16.mxu0 0
    %109 = vmatpush1.bf16.msra.mxu0 0
    %110 = vmatprep.subr.bf16.mxu0 0
    %111 = vmatpush1.bf16.msra.mxu0 0
    %112 = vmatprep.subr.bf16.mxu0 0
    %113 = vmatpush1.bf16.msra.mxu0 0
    %114 = vmatprep.subr.bf16.mxu0 0
    %115 = vmatpush1.bf16.msra.mxu0 0
    %116 = vmatprep.subr.bf16.mxu0 0
    %117 = vmatpush1.bf16.msra.mxu0 0
    %118 = vmatprep.subr.bf16.mxu0 0
    %119 = vmatpush1.bf16.msra.mxu0 0
    %120 = vmatprep.mubr.bf16.mxu0 0
    %121 = vmatmul.mubr.bf16.gmra.mrb[0].mxu0 %v86
    %v122 = vpop.f32.mrb[0].mxu0
    %v123 = vadd.f32 0.0, %v122
    %v124 = vpop.f32.mrb[0].mxu0
    %v125 = vadd.f32 0.0, %v124
    %v126 = vpop.f32.mrb[0].mxu0
    %v127 = vpop.f32.mrb[0].mxu0
    %128 = vdwg.mxu0
    %129 = vmatprep.subr.bf16.mxu0 %v79
    %130 = vmatpush1.bf16.msra.mxu0 %v78
    %131 = vmatprep.subr.bf16.mxu0 0
    %132 = vmatpush1.bf16.msra.mxu0 0
    %133 = vmatprep.subr.bf16.mxu0 0
    %134 = vmatpush1.bf16.msra.mxu0 0
    %135 = vmatprep.subr.bf16.mxu0 0
    %136 = vmatpush1.bf16.msra.mxu0 0
    %137 = vmatprep.subr.bf16.mxu0 0
    %138 = vmatpush1.bf16.msra.mxu0 0
    %139 = vmatprep.subr.bf16.mxu0 0
    %140 = vmatpush1.bf16.msra.mxu0 0
    %141 = vmatprep.subr.bf16.mxu0 0
    %142 = vmatpush1.bf16.msra.mxu0 0
    %143 = vmatprep.subr.bf16.mxu0 0
    %144 = vmatpush1.bf16.msra.mxu0 0
    %145 = vmatprep.subr.bf16.mxu0 0
    %146 = vmatpush1.bf16.msra.mxu0 0
    %147 = vmatprep.subr.bf16.mxu0 0
    %148 = vmatpush1.bf16.msra.mxu0 0
    %149 = vmatprep.subr.bf16.mxu0 0
    %150 = vmatpush1.bf16.msra.mxu0 0
    %151 = vmatprep.subr.bf16.mxu0 0
    %152 = vmatpush1.bf16.msra.mxu0 0
    %153 = vmatprep.subr.bf16.mxu0 0
    %154 = vmatpush1.bf16.msra.mxu0 0
    %155 = vmatprep.subr.bf16.mxu0 0
    %156 = vmatpush1.bf16.msra.mxu0 0
    %157 = vmatprep.subr.bf16.mxu0 0
    %158 = vmatpush1.bf16.msra.mxu0 0
    %159 = vmatprep.subr.bf16.mxu0 0
    %160 = vmatpush1.bf16.msra.mxu0 0
    %161 = vmatprep.mubr.bf16.mxu0 0
    %162 = vmatmul.mubr.bf16.gmra.mrb[0].mxu0 %v86
    %v163 = vpop.f32.mrb[0].mxu0
    %v164 = vadd.f32 0.0, %v163
    %v165 = vpop.f32.mrb[0].mxu0
    %v166 = vadd.f32 0.0, %v165
    %v167 = vpop.f32.mrb[0].mxu0
    %v168 = vpop.f32.mrb[0].mxu0
    %169 = vdwg.mxu0
    %v174 = vunpack.c.l.b16 %v52
    %v175 = vunpack.c.h.b16 %v52
    %v176 = vunpack.c.l.b16 %v53
    %v177 = vunpack.c.h.b16 %v53
    %v178 = vunpack.c.l.b16 %v54
    %v179 = vunpack.c.h.b16 %v54
    %v180 = vunpack.c.l.b16 %v55
    %v181 = vunpack.c.h.b16 %v55
    %v182 = vpack.c.b16 %v178, %v174
    %v183 = vpack.c.b16 %v179, %v175
    %v184 = vpack.c.b16 %v180, %v176
    %v185 = vpack.c.b16 %v181, %v177
    %v191 = vsel %vm84, %v45, 0
    %193 = vmatprep.subr.bf16.mxu0 %v183
    %194 = vmatpush1.bf16.msra.mxu0 %v182
    %195 = vmatprep.subr.bf16.mxu0 0
    %196 = vmatpush1.bf16.msra.mxu0 0
    %197 = vmatprep.subr.bf16.mxu0 0
    %198 = vmatpush1.bf16.msra.mxu0 0
    %199 = vmatprep.subr.bf16.mxu0 0
    %200 = vmatpush1.bf16.msra.mxu0 0
    %201 = vmatprep.subr.bf16.mxu0 0
    %202 = vmatpush1.bf16.msra.mxu0 0
    %203 = vmatprep.subr.bf16.mxu0 0
    %204 = vmatpush1.bf16.msra.mxu0 0
    %205 = vmatprep.subr.bf16.mxu0 0
    %206 = vmatpush1.bf16.msra.mxu0 0
    %207 = vmatprep.subr.bf16.mxu0 0
    %208 = vmatpush1.bf16.msra.mxu0 0
    %209 = vmatprep.subr.bf16.mxu0 0
    %210 = vmatpush1.bf16.msra.mxu0 0
    %211 = vmatprep.subr.bf16.mxu0 0
    %212 = vmatpush1.bf16.msra.mxu0 0
    %213 = vmatprep.subr.bf16.mxu0 0
    %214 = vmatpush1.bf16.msra.mxu0 0
    %215 = vmatprep.subr.bf16.mxu0 0
    %216 = vmatpush1.bf16.msra.mxu0 0
    %217 = vmatprep.subr.bf16.mxu0 0
    %218 = vmatpush1.bf16.msra.mxu0 0
    %219 = vmatprep.subr.bf16.mxu0 0
    %220 = vmatpush1.bf16.msra.mxu0 0
    %221 = vmatprep.subr.bf16.mxu0 0
    %222 = vmatpush1.bf16.msra.mxu0 0
    %223 = vmatprep.subr.bf16.mxu0 0
    %224 = vmatpush1.bf16.msra.mxu0 0
    %225 = vmatprep.mubr.bf16.mxu0 0
    %226 = vmatmul.mubr.bf16.gmra.mrb[0].mxu0 %v191
    %v227 = vpop.f32.mrb[0].mxu0
    %v228 = vadd.f32 0.0, %v227
    %v229 = vpop.f32.mrb[0].mxu0
    %v230 = vadd.f32 0.0, %v229
    %v231 = vpop.f32.mrb[0].mxu0
    %v232 = vpop.f32.mrb[0].mxu0
    %233 = vdwg.mxu0
    %234 = vmatprep.subr.bf16.mxu0 %v185
    %235 = vmatpush1.bf16.msra.mxu0 %v184
    %236 = vmatprep.subr.bf16.mxu0 0
    %237 = vmatpush1.bf16.msra.mxu0 0
    %238 = vmatprep.subr.bf16.mxu0 0
    %239 = vmatpush1.bf16.msra.mxu0 0
    %240 = vmatprep.subr.bf16.mxu0 0
    %241 = vmatpush1.bf16.msra.mxu0 0
    %242 = vmatprep.subr.bf16.mxu0 0
    %243 = vmatpush1.bf16.msra.mxu0 0
    %244 = vmatprep.subr.bf16.mxu0 0
    %245 = vmatpush1.bf16.msra.mxu0 0
    %246 = vmatprep.subr.bf16.mxu0 0
    %247 = vmatpush1.bf16.msra.mxu0 0
    %248 = vmatprep.subr.bf16.mxu0 0
    %249 = vmatpush1.bf16.msra.mxu0 0
    %250 = vmatprep.subr.bf16.mxu0 0
    %251 = vmatpush1.bf16.msra.mxu0 0
    %252 = vmatprep.subr.bf16.mxu0 0
    %253 = vmatpush1.bf16.msra.mxu0 0
    %254 = vmatprep.subr.bf16.mxu0 0
    %255 = vmatpush1.bf16.msra.mxu0 0
    %256 = vmatprep.subr.bf16.mxu0 0
    %257 = vmatpush1.bf16.msra.mxu0 0
    %258 = vmatprep.subr.bf16.mxu0 0
    %259 = vmatpush1.bf16.msra.mxu0 0
    %260 = vmatprep.subr.bf16.mxu0 0
    %261 = vmatpush1.bf16.msra.mxu0 0
    %262 = vmatprep.subr.bf16.mxu0 0
    %263 = vmatpush1.bf16.msra.mxu0 0
    %264 = vmatprep.subr.bf16.mxu0 0
    %265 = vmatpush1.bf16.msra.mxu0 0
    %266 = vmatprep.mubr.bf16.mxu0 0
    %267 = vmatmul.mubr.bf16.gmra.mrb[0].mxu0 %v191
    %v268 = vpop.f32.mrb[0].mxu0
    %v269 = vadd.f32 0.0, %v268
    %v270 = vpop.f32.mrb[0].mxu0
    %v271 = vadd.f32 0.0, %v270
    %v272 = vpop.f32.mrb[0].mxu0
    %v273 = vpop.f32.mrb[0].mxu0
    %274 = vdwg.mxu0
    %v279 = vunpack.c.l.b16 %v56
    %v280 = vunpack.c.h.b16 %v56
    %v281 = vunpack.c.l.b16 %v57
    %v282 = vunpack.c.h.b16 %v57
    %v283 = vunpack.c.l.b16 %v58
    %v284 = vunpack.c.h.b16 %v58
    %v285 = vunpack.c.l.b16 %v59
    %v286 = vunpack.c.h.b16 %v59
    %v287 = vpack.c.b16 %v283, %v279
    %v288 = vpack.c.b16 %v284, %v280
    %v289 = vpack.c.b16 %v285, %v281
    %v290 = vpack.c.b16 %v286, %v282
    %v296 = vsel %vm84, %v46, 0
    %298 = vmatprep.subr.bf16.mxu0 %v288
    %299 = vmatpush1.bf16.msra.mxu0 %v287
    %300 = vmatprep.subr.bf16.mxu0 0
    %301 = vmatpush1.bf16.msra.mxu0 0
    %302 = vmatprep.subr.bf16.mxu0 0
    %303 = vmatpush1.bf16.msra.mxu0 0
    %304 = vmatprep.subr.bf16.mxu0 0
    %305 = vmatpush1.bf16.msra.mxu0 0
    %306 = vmatprep.subr.bf16.mxu0 0
    %307 = vmatpush1.bf16.msra.mxu0 0
    %308 = vmatprep.subr.bf16.mxu0 0
    %309 = vmatpush1.bf16.msra.mxu0 0
    %310 = vmatprep.subr.bf16.mxu0 0
    %311 = vmatpush1.bf16.msra.mxu0 0
    %312 = vmatprep.subr.bf16.mxu0 0
    %313 = vmatpush1.bf16.msra.mxu0 0
    %314 = vmatprep.subr.bf16.mxu0 0
    %315 = vmatpush1.bf16.msra.mxu0 0
    %316 = vmatprep.subr.bf16.mxu0 0
    %317 = vmatpush1.bf16.msra.mxu0 0
    %318 = vmatprep.subr.bf16.mxu0 0
    %319 = vmatpush1.bf16.msra.mxu0 0
    %320 = vmatprep.subr.bf16.mxu0 0
    %321 = vmatpush1.bf16.msra.mxu0 0
    %322 = vmatprep.subr.bf16.mxu0 0
    %323 = vmatpush1.bf16.msra.mxu0 0
    %324 = vmatprep.subr.bf16.mxu0 0
    %325 = vmatpush1.bf16.msra.mxu0 0
    %326 = vmatprep.subr.bf16.mxu0 0
    %327 = vmatpush1.bf16.msra.mxu0 0
    %328 = vmatprep.subr.bf16.mxu0 0
    %329 = vmatpush1.bf16.msra.mxu0 0
    %330 = vmatprep.mubr.bf16.mxu0 0
    %331 = vmatmul.mubr.bf16.gmra.mrb[0].mxu0 %v296
    %v332 = vpop.f32.mrb[0].mxu0
    %v333 = vadd.f32 0.0, %v332
    %v334 = vpop.f32.mrb[0].mxu0
    %v335 = vadd.f32 0.0, %v334
    %v336 = vpop.f32.mrb[0].mxu0
    %v337 = vpop.f32.mrb[0].mxu0
    %338 = vdwg.mxu0
    %339 = vmatprep.subr.bf16.mxu0 %v290
    %340 = vmatpush1.bf16.msra.mxu0 %v289
    %341 = vmatprep.subr.bf16.mxu0 0
    %342 = vmatpush1.bf16.msra.mxu0 0
    %343 = vmatprep.subr.bf16.mxu0 0
    %344 = vmatpush1.bf16.msra.mxu0 0
    %345 = vmatprep.subr.bf16.mxu0 0
    %346 = vmatpush1.bf16.msra.mxu0 0
    %347 = vmatprep.subr.bf16.mxu0 0
    %348 = vmatpush1.bf16.msra.mxu0 0
    %349 = vmatprep.subr.bf16.mxu0 0
    %350 = vmatpush1.bf16.msra.mxu0 0
    %351 = vmatprep.subr.bf16.mxu0 0
    %352 = vmatpush1.bf16.msra.mxu0 0
    %353 = vmatprep.subr.bf16.mxu0 0
    %354 = vmatpush1.bf16.msra.mxu0 0
    %355 = vmatprep.subr.bf16.mxu0 0
    %356 = vmatpush1.bf16.msra.mxu0 0
    %357 = vmatprep.subr.bf16.mxu0 0
    %358 = vmatpush1.bf16.msra.mxu0 0
    %359 = vmatprep.subr.bf16.mxu0 0
    %360 = vmatpush1.bf16.msra.mxu0 0
    %361 = vmatprep.subr.bf16.mxu0 0
    %362 = vmatpush1.bf16.msra.mxu0 0
    %363 = vmatprep.subr.bf16.mxu0 0
    %364 = vmatpush1.bf16.msra.mxu0 0
    %365 = vmatprep.subr.bf16.mxu0 0
    %366 = vmatpush1.bf16.msra.mxu0 0
    %367 = vmatprep.subr.bf16.mxu0 0
    %368 = vmatpush1.bf16.msra.mxu0 0
    %369 = vmatprep.subr.bf16.mxu0 0
    %370 = vmatpush1.bf16.msra.mxu0 0
    %371 = vmatprep.mubr.bf16.mxu0 0
    %372 = vmatmul.mubr.bf16.gmra.mrb[0].mxu0 %v296
    %v373 = vpop.f32.mrb[0].mxu0
    %v374 = vadd.f32 0.0, %v373
    %v375 = vpop.f32.mrb[0].mxu0
    %v376 = vadd.f32 0.0, %v375
    %v377 = vpop.f32.mrb[0].mxu0
    %v378 = vpop.f32.mrb[0].mxu0
    %379 = vdwg.mxu0
    %v384 = vunpack.c.l.b16 %v60
    %v385 = vunpack.c.h.b16 %v60
    %v386 = vunpack.c.l.b16 %v61
    %v387 = vunpack.c.h.b16 %v61
    %v388 = vunpack.c.l.b16 %v62
    %v389 = vunpack.c.h.b16 %v62
    %v390 = vunpack.c.l.b16 %v63
    %v391 = vunpack.c.h.b16 %v63
    %v392 = vpack.c.b16 %v388, %v384
    %v393 = vpack.c.b16 %v389, %v385
    %v394 = vpack.c.b16 %v390, %v386
    %v395 = vpack.c.b16 %v391, %v387
    %v401 = vsel %vm84, %v47, 0
    %403 = vmatprep.subr.bf16.mxu0 %v393
    %404 = vmatpush1.bf16.msra.mxu0 %v392
    %405 = vmatprep.subr.bf16.mxu0 0
    %406 = vmatpush1.bf16.msra.mxu0 0
    %407 = vmatprep.subr.bf16.mxu0 0
    %408 = vmatpush1.bf16.msra.mxu0 0
    %409 = vmatprep.subr.bf16.mxu0 0
    %410 = vmatpush1.bf16.msra.mxu0 0
    %411 = vmatprep.subr.bf16.mxu0 0
    %412 = vmatpush1.bf16.msra.mxu0 0
    %413 = vmatprep.subr.bf16.mxu0 0
    %414 = vmatpush1.bf16.msra.mxu0 0
    %415 = vmatprep.subr.bf16.mxu0 0
    %416 = vmatpush1.bf16.msra.mxu0 0
    %417 = vmatprep.subr.bf16.mxu0 0
    %418 = vmatpush1.bf16.msra.mxu0 0
    %419 = vmatprep.subr.bf16.mxu0 0
    %420 = vmatpush1.bf16.msra.mxu0 0
    %421 = vmatprep.subr.bf16.mxu0 0
    %422 = vmatpush1.bf16.msra.mxu0 0
    %423 = vmatprep.subr.bf16.mxu0 0
    %424 = vmatpush1.bf16.msra.mxu0 0
    %425 = vmatprep.subr.bf16.mxu0 0
    %426 = vmatpush1.bf16.msra.mxu0 0
    %427 = vmatprep.subr.bf16.mxu0 0
    %428 = vmatpush1.bf16.msra.mxu0 0
    %429 = vmatprep.subr.bf16.mxu0 0
    %430 = vmatpush1.bf16.msra.mxu0 0
    %431 = vmatprep.subr.bf16.mxu0 0
    %432 = vmatpush1.bf16.msra.mxu0 0
    %433 = vmatprep.subr.bf16.mxu0 0
    %434 = vmatpush1.bf16.msra.mxu0 0
    %435 = vmatprep.mubr.bf16.mxu0 0
    %436 = vmatmul.mubr.bf16.gmra.mrb[0].mxu0 %v401
    %v437 = vpop.f32.mrb[0].mxu0
    %v438 = vadd.f32 0.0, %v437
    %v439 = vpop.f32.mrb[0].mxu0
    %v440 = vadd.f32 0.0, %v439
    %v441 = vpop.f32.mrb[0].mxu0
    %v442 = vpop.f32.mrb[0].mxu0
    %443 = vdwg.mxu0
    %444 = vmatprep.subr.bf16.mxu0 %v395
    %445 = vmatpush1.bf16.msra.mxu0 %v394
    %446 = vmatprep.subr.bf16.mxu0 0
    %447 = vmatpush1.bf16.msra.mxu0 0
    %448 = vmatprep.subr.bf16.mxu0 0
    %449 = vmatpush1.bf16.msra.mxu0 0
    %450 = vmatprep.subr.bf16.mxu0 0
    %451 = vmatpush1.bf16.msra.mxu0 0
    %452 = vmatprep.subr.bf16.mxu0 0
    %453 = vmatpush1.bf16.msra.mxu0 0
    %454 = vmatprep.subr.bf16.mxu0 0
    %455 = vmatpush1.bf16.msra.mxu0 0
    %456 = vmatprep.subr.bf16.mxu0 0
    %457 = vmatpush1.bf16.msra.mxu0 0
    %458 = vmatprep.subr.bf16.mxu0 0
    %459 = vmatpush1.bf16.msra.mxu0 0
    %460 = vmatprep.subr.bf16.mxu0 0
    %461 = vmatpush1.bf16.msra.mxu0 0
    %462 = vmatprep.subr.bf16.mxu0 0
    %463 = vmatpush1.bf16.msra.mxu0 0
    %464 = vmatprep.subr.bf16.mxu0 0
    %465 = vmatpush1.bf16.msra.mxu0 0
    %466 = vmatprep.subr.bf16.mxu0 0
    %467 = vmatpush1.bf16.msra.mxu0 0
    %468 = vmatprep.subr.bf16.mxu0 0
    %469 = vmatpush1.bf16.msra.mxu0 0
    %470 = vmatprep.subr.bf16.mxu0 0
    %471 = vmatpush1.bf16.msra.mxu0 0
    %472 = vmatprep.subr.bf16.mxu0 0
    %473 = vmatpush1.bf16.msra.mxu0 0
    %474 = vmatprep.subr.bf16.mxu0 0
    %475 = vmatpush1.bf16.msra.mxu0 0
    %476 = vmatprep.mubr.bf16.mxu0 0
    %477 = vmatmul.mubr.bf16.gmra.mrb[0].mxu0 %v401
    %v478 = vpop.f32.mrb[0].mxu0
    %v479 = vadd.f32 0.0, %v478
    %v480 = vpop.f32.mrb[0].mxu0
    %v481 = vadd.f32 0.0, %v480
    %v482 = vpop.f32.mrb[0].mxu0
    %v483 = vpop.f32.mrb[0].mxu0
    %484 = vdwg.mxu0
    %v485 = vadd.f32 %v123, %v125
    %v486 = vadd.f32 %v485, %v164
    %v487 = vadd.f32 %v486, %v166
    %488 = vadd.xlane.f32.xlu0 %v487
    %v489 = vpop.xlane.xlu0 %488
    %v490 = vadd.f32 %v228, %v230
    %v491 = vadd.f32 %v490, %v269
    %v492 = vadd.f32 %v491, %v271
    %493 = vadd.xlane.f32.xlu0 %v492
    %v494 = vpop.xlane.xlu0 %493
    %v495 = vadd.f32 %v333, %v335
    %v496 = vadd.f32 %v495, %v374
    %v497 = vadd.f32 %v496, %v376
    %498 = vadd.xlane.f32.xlu0 %v497
    %v499 = vpop.xlane.xlu0 %498
    %v500 = vadd.f32 %v438, %v440
    %v501 = vadd.f32 %v500, %v479
    %v502 = vadd.f32 %v501, %v481
    %503 = vadd.xlane.f32.xlu0 %v502
    %v504 = vpop.xlane.xlu0 %503
    %v505 = vadd.f32 %v489, %v494
    %v506 = vadd.f32 %v505, %v499
    %v507 = vadd.f32 %v506, %v504
    %v508 = vrcp.pop 2048.0
    %v509 = vmul.f32 %v507, %v508
    %v510 = vsub.f32 %v123, %v509
    %v511 = vsub.f32 %v125, %v509
    %v512 = vsub.f32 %v164, %v509
    %v513 = vsub.f32 %v166, %v509
    %v514 = vsub.f32 %v228, %v509
    %v515 = vsub.f32 %v230, %v509
    %v516 = vsub.f32 %v269, %v509
    %v517 = vsub.f32 %v271, %v509
    %v518 = vsub.f32 %v333, %v509
    %v519 = vsub.f32 %v335, %v509
    %v520 = vsub.f32 %v374, %v509
    %v521 = vsub.f32 %v376, %v509
    %v522 = vsub.f32 %v438, %v509
    %v523 = vsub.f32 %v440, %v509
    %v524 = vsub.f32 %v479, %v509
    %v525 = vsub.f32 %v481, %v509
    %v526 = vmul.f32 %v510, %v510
    %v527 = vmul.f32 %v511, %v511
    %v528 = vmul.f32 %v512, %v512
    %v529 = vmul.f32 %v513, %v513
    %v530 = vmul.f32 %v514, %v514
    %v531 = vmul.f32 %v515, %v515
    %v532 = vmul.f32 %v516, %v516
    %v533 = vmul.f32 %v517, %v517
    %v534 = vmul.f32 %v518, %v518
    %v535 = vmul.f32 %v519, %v519
    %v536 = vmul.f32 %v520, %v520
    %v537 = vmul.f32 %v521, %v521
    %v538 = vmul.f32 %v522, %v522
    %v539 = vmul.f32 %v523, %v523
    %v540 = vmul.f32 %v524, %v524
    %v541 = vmul.f32 %v525, %v525
    %v542 = vadd.f32 %v526, %v527
    %v543 = vadd.f32 %v542, %v528
    %v544 = vadd.f32 %v543, %v529
    %545 = vadd.xlane.f32.xlu0 %v544
    %v546 = vpop.xlane.xlu0 %545
    %v547 = vadd.f32 %v530, %v531
    %v548 = vadd.f32 %v547, %v532
    %v549 = vadd.f32 %v548, %v533
    %550 = vadd.xlane.f32.xlu0 %v549
    %v551 = vpop.xlane.xlu0 %550
    %v552 = vadd.f32 %v534, %v535
    %v553 = vadd.f32 %v552, %v536
    %v554 = vadd.f32 %v553, %v537
    %555 = vadd.xlane.f32.xlu0 %v554
    %v556 = vpop.xlane.xlu0 %555
    %v557 = vadd.f32 %v538, %v539
    %v558 = vadd.f32 %v557, %v540
    %v559 = vadd.f32 %v558, %v541
    %560 = vadd.xlane.f32.xlu0 %v559
    %v561 = vpop.xlane.xlu0 %560
    %v562 = vadd.f32 %v546, %v551
    %v563 = vadd.f32 %v562, %v556
    %v564 = vadd.f32 %v563, %v561
    %v565 = vmul.f32 %v564, %v508
    %v566 = vld [vmem:[%s2] sm:$0xff]
    %v567 = vadd.f32 %v565, 0.001
    %v568 = vrsqrt.pop %v567
    %v569 = vmul.f32 %v566, %v568
    %v570 = vmul.f32 %v509, %v569
    %572 = vrot.lane.b32.xlu0 %v570, 1
    %v573 = vpop.permute.xlu0 %572
    %v575 = vsub.f32 %v566, %v573
    %577 = vset.pattern.permute.xlu0 0
    %578 = vperm.xlu0 %577, %v569
    %v579 = vpop.permute.xlu0 %578
    %v581 = vmul.f32 %v123, %v579
    %v582 = vmul.f32 %v125, %v579
    %v583 = vmul.f32 %v164, %v579
    %v584 = vmul.f32 %v166, %v579
    %v585 = vmul.f32 %v228, %v579
    %v586 = vmul.f32 %v230, %v579
    %v587 = vmul.f32 %v269, %v579
    %v588 = vmul.f32 %v271, %v579
    %v589 = vmul.f32 %v333, %v579
    %v590 = vmul.f32 %v335, %v579
    %v591 = vmul.f32 %v374, %v579
    %v592 = vmul.f32 %v376, %v579
    %v593 = vmul.f32 %v438, %v579
    %v594 = vmul.f32 %v440, %v579
    %v595 = vmul.f32 %v479, %v579
    %v596 = vmul.f32 %v481, %v579
    %598 = vset.pattern.permute.xlu0 1
    %599 = vperm.xlu0 %598, %v575
    %v600 = vpop.permute.xlu0 %599
    %v602 = vadd.f32 %v581, %v600
    %v603 = vadd.f32 %v582, %v600
    %v604 = vadd.f32 %v583, %v600
    %v605 = vadd.f32 %v584, %v600
    %v606 = vadd.f32 %v585, %v600
    %v607 = vadd.f32 %v586, %v600
    %v608 = vadd.f32 %v587, %v600
    %v609 = vadd.f32 %v588, %v600
    %v610 = vadd.f32 %v589, %v600
    %v611 = vadd.f32 %v590, %v600
    %v612 = vadd.f32 %v591, %v600
    %v613 = vadd.f32 %v592, %v600
    %v614 = vadd.f32 %v593, %v600
    %v615 = vadd.f32 %v594, %v600
    %v616 = vadd.f32 %v595, %v600
    %v617 = vadd.f32 %v596, %v600
    %v618 = vmax.f32 %v602, 0.0
    %v619 = vmax.f32 %v603, 0.0
    %v620 = vmax.f32 %v604, 0.0
    %v621 = vmax.f32 %v605, 0.0
    %v622 = vmax.f32 %v606, 0.0
    %v623 = vmax.f32 %v607, 0.0
    %v624 = vmax.f32 %v608, 0.0
    %v625 = vmax.f32 %v609, 0.0
    %v626 = vmax.f32 %v610, 0.0
    %v627 = vmax.f32 %v611, 0.0
    %v628 = vmax.f32 %v612, 0.0
    %v629 = vmax.f32 %v613, 0.0
    %v630 = vmax.f32 %v614, 0.0
    %v631 = vmax.f32 %v615, 0.0
    %v632 = vmax.f32 %v616, 0.0
    %v633 = vmax.f32 %v617, 0.0
    %634 = vst [vmem:[#allocation7] sm:$0xff] %v618
    %635 = vst [vmem:[#allocation7 + $0x8] sm:$0xff] %v619
    %636 = vst [vmem:[#allocation7 + $0x10] sm:$0xff] %v622
    %637 = vst [vmem:[#allocation7 + $0x18] sm:$0xff] %v623
    %638 = vst [vmem:[#allocation7 + $0x20] sm:$0xff] %v626
    %639 = vst [vmem:[#allocation7 + $0x28] sm:$0xff] %v627
    %640 = vst [vmem:[#allocation7 + $0x30] sm:$0xff] %v630
    %641 = vst [vmem:[#allocation7 + $0x38] sm:$0xff] %v631
    %s642 = scalar_lea.vmem [#allocation7], 64
    %643 = vst [vmem:[%s642] sm:$0xff] %v620
    %644 = vst [vmem:[%s642 + $0x8] sm:$0xff] %v621
    %645 = vst [vmem:[%s642 + $0x10] sm:$0xff] %v624
    %646 = vst [vmem:[%s642 + $0x18] sm:$0xff] %v625
    %647 = vst [vmem:[%s642 + $0x20] sm:$0xff] %v628
    %648 = vst [vmem:[%s642 + $0x28] sm:$0xff] %v629
    %649 = vst [vmem:[%s642 + $0x30] sm:$0xff] %v632
    %650 = vst [vmem:[%s642 + $0x38] sm:$0xff] %v633
    // Predicated region
    $region22: #{tpu_custom_call.1} parent=1 // pred_check
      _
    $region23: #{tpu_custom_call.1} parent=1 // pred_check_branch
      %652 = sbr.rel (0) target = $region25
    $region24: #{tpu_custom_call.1} parent=1 // pred_region
      %s654 = ssub.s32 2048, 2048
      %655 = vsyncadd [#allocation4], %s654
      %s656 = sshll.u32 [#allocation7], 4
      %s657 = int_to_ptr.vmem [resolvable:$true] %s656
      %662 = dma.vmem_to_hbm [thread:$0]  %s657, 2048, %s3, [#allocation4], 256, 256, 16
    $region25: #{tpu_custom_call.1} parent=1 // pred_fallthru
      _
    // Predicated region
    $region26: #{tpu_custom_call.1} parent=1 // pred_check
      _
    $region27: #{tpu_custom_call.1} parent=1 // pred_check_branch
      %664 = sbr.rel (0) target = $region29
    $region28: #{tpu_custom_call.1} parent=1 // pred_region
      %665 = dma.done [#allocation4], 2048
    $region29: #{tpu_custom_call.1} parent=1 // pred_fallthru
      _
    %666 = vsyncpa [#allocation3], 1
    %667 = vsyncpa [#allocation6], 1
    %668 = vsyncpa [#allocation4], 1

</llo_original>
